<compile_context>
chip_gen: v5e
topology: v5e:2x2
jax: 0.10.0
libtpu: 0.0.40
codegen_flags: <defaults>
</compile_context>

<pallas_src>
import functools

import jax
import jax.numpy as jnp
from jax.experimental import pallas as pl
from jax.experimental.pallas import tpu as pltpu


def _round_up(a, b):
    return ((a + b - 1) // b) * b


def mlp_kernel(x_ref, w1_ref, b1_ref, w2_ref, b2_ref, o_ref):
    # fc1: x (tm, I) bf16 @ w1 (I, H) bf16 -> (tm, H) f32  (canonical MXU contraction).
    h = jnp.dot(x_ref[...], w1_ref[...], preferred_element_type=jnp.float32)
    # bias + ReLU in f32.
    h = jnp.maximum(h + b1_ref[...], 0.0)
    # fc2: h (tm, H) bf16 @ w2 (H, OP) bf16 -> (tm, OP) f32.
    logits = jnp.dot(h.astype(jnp.bfloat16), w2_ref[...],
                     preferred_element_type=jnp.float32)
    logits = logits + b2_ref[...]          # padded columns get -1e30 -> softmax prob 0
    # Numerically stable softmax over dim=1 with EXACT normalization: the reciprocal is
    # taken on the (tm, 1) denominator only, so the extra cost is negligible.
    m = jnp.max(logits, axis=1, keepdims=True)
    e = jnp.exp(logits - m)
    denom = jnp.sum(e, axis=1, keepdims=True)
    o_ref[...] = (e * (1.0 / denom)).astype(o_ref.dtype)


def prepare_mlp_params(w1, b1, w2, b2):
    """One-time weight packing -- call once, cache, and reuse across forward calls.

    Inputs are in PyTorch nn.Linear layout: w1 (hidden, input), b1 (hidden,),
    w2 (output, hidden), b2 (output,). Returns bf16 weights pre-transposed to
    MXU-canonical (in, out) layouts, with fc2 padded to a lane-dense multiple of
    128 output columns (zero weights + -1e30 f32 bias -> softmax prob exactly 0).
    """
    H, I = w1.shape
    O, H2 = w2.shape
    assert H2 == H
    OP = _round_up(O, 128)
    w1t = jnp.asarray(w1, jnp.bfloat16).T                         # (I, H)
    b1r = jnp.asarray(b1, jnp.float32).reshape(1, H)               # (1, H) f32
    w2t = (jnp.zeros((H, OP), jnp.bfloat16)
           .at[:, :O].set(jnp.asarray(w2, jnp.bfloat16).T))        # (H, OP)
    b2r = (jnp.full((1, OP), -1e30, jnp.float32)
           .at[0, :O].set(jnp.asarray(b2, jnp.float32)))           # (1, OP) f32
    return {"w1": w1t, "b1": b1r, "w2": w2t, "b2": b2r, "out_features": O}


@functools.partial(jax.jit, static_argnums=(5,))
def _mlp_forward(x, w1t, b1r, w2t, b2r, out_features):
    B, I = x.shape
    H = w1t.shape[1]
    OP = w2t.shape[1]
    O = out_features

    # Batch tile: multiple of 16 (bf16 sublane packing); sized so the "parallel" batch
    # axis has >= 2 grid steps (v7x dual TensorCore). 256-row tiles for large batches.
    if B >= 512:
        tm = 256
    else:
        tm = max(16, _round_up((B + 1) // 2, 16))
    Bp = max(2 * tm, _round_up(B, tm))

    xb = jnp.asarray(x, jnp.bfloat16)
    if Bp != B:
        xb = jnp.pad(xb, ((0, Bp - B), (0, 0)))

    cost = pl.CostEstimate(
        flops=2 * Bp * I * H + 2 * Bp * H * OP,
        transcendentals=Bp * OP,
        bytes_accessed=(Bp * I * 2 + I * H * 2 + H * 4 + H * OP * 2 + OP * 4
                        + Bp * OP * 4),
    )

    out = pl.pallas_call(
        mlp_kernel,
        out_shape=jax.ShapeDtypeStruct((Bp, OP), jnp.float32),
        grid=(Bp // tm,),
        in_specs=[
            pl.BlockSpec((tm, I), lambda i: (i, 0)),   # x: tiled over batch rows
            # Constant-index resident blocks: single-buffered (double-buffering a block
            # whose index_map never changes only wastes VMEM).
            pl.BlockSpec((I, H), lambda i: (0, 0), pipeline_mode=pl.Buffered(1)),
            pl.BlockSpec((1, H), lambda i: (0, 0), pipeline_mode=pl.Buffered(1)),
            pl.BlockSpec((H, OP), lambda i: (0, 0), pipeline_mode=pl.Buffered(1)),
            pl.BlockSpec((1, OP), lambda i: (0, 0), pipeline_mode=pl.Buffered(1)),
        ],
        out_specs=pl.BlockSpec((tm, OP), lambda i: (i, 0)),   # lane-dense (OP % 128 == 0)
        compiler_params=pltpu.CompilerParams(
            dimension_semantics=("parallel",),
            # <= ~48 MiB is safe on every generation (v7x has 64 MiB/TC physical);
            # on v5e/v6e (128 MiB VMEM) this can be raised further for larger shapes.
            vmem_limit_bytes=48 * 1024 * 1024),
        cost_estimate=cost,
    )(xb, w1t, b1r, w2t, b2r)

    return out[:B, :O]


def mlp_base_forward(x, params):
    """x: (B, input_size) f32; params: output of prepare_mlp_params.
    Returns (B, output_size) softmax probabilities (f32)."""
    return _mlp_forward(x, params["w1"], params["b1"], params["w2"], params["b2"],
                        params["out_features"])


if __name__ == "__main__":
    # Small shapes consistent with the MLP forward: batch=8, input=32, hidden=32, output=16
    B, INPUT, HIDDEN, OUTPUT = 8, 32, 32, 16

    key = jax.random.PRNGKey(0)
    kx, kw1, kb1, kw2, kb2 = jax.random.split(key, 5)

    x = jax.random.normal(kx, (B, INPUT), dtype=jnp.float32)

    # Deterministic PyTorch-Linear-style init: U(-1/sqrt(fan_in), 1/sqrt(fan_in))
    bound1 = 1.0 / (INPUT ** 0.5)
    w1 = jax.random.uniform(kw1, (HIDDEN, INPUT), jnp.float32, -bound1, bound1)
    b1 = jax.random.uniform(kb1, (HIDDEN,), jnp.float32, -bound1, bound1)
    bound2 = 1.0 / (HIDDEN ** 0.5)
    w2 = jax.random.uniform(kw2, (OUTPUT, HIDDEN), jnp.float32, -bound2, bound2)
    b2 = jax.random.uniform(kb2, (OUTPUT,), jnp.float32, -bound2, bound2)

    # One-time weight packing (cached / reused across calls), then the fused forward.
    params = prepare_mlp_params(w1, b1, w2, b2)
    out = mlp_base_forward(x, params)
    out = jax.block_until_ready(out)

    # Sanity check against pure-JAX f32 reference (tolerance loosened for the bf16
    # MXU operands; normalization itself is exact).
    h_ref = jnp.maximum(x @ w1.T + b1, 0.0)
    ref = jax.nn.softmax(h_ref @ w2.T + b2, axis=1)
    assert out.shape == (B, OUTPUT)
    assert jnp.allclose(out, ref, atol=2e-2)
    assert jnp.allclose(jnp.sum(out, axis=1), 1.0, atol=1e-5)

    print("KERNEL_OK")
</pallas_src>

<mosaic_0001>
module attributes {stable_mosaic.version = 11 : i64} {
  func.func @mlp_kernel(%arg0: i32, %arg1: memref<16x32xbf16, #tpu.memory_space<vmem>>, %arg2: memref<32x32xbf16, #tpu.memory_space<vmem>>, %arg3: memref<1x32xf32, #tpu.memory_space<vmem>>, %arg4: memref<32x128xbf16, #tpu.memory_space<vmem>>, %arg5: memref<1x128xf32, #tpu.memory_space<vmem>>, %arg6: memref<16x128xf32, #tpu.memory_space<vmem>>) attributes {dimension_semantics = [#tpu.dimension_semantics<parallel>], iteration_bounds = array<i64: 2>, scalar_prefetch = 0 : i64, scratch_operands = 0 : i64, tpu.core_type = #tpu.core_type<tc>, window_params = [{transform_indices = @transform_0, window_bounds = array<i64: 16, 32>}, {pipeline_mode = #tpu.pipeline_mode<synchronous>, transform_indices = @transform_1, window_bounds = array<i64: 32, 32>}, {pipeline_mode = #tpu.pipeline_mode<synchronous>, transform_indices = @transform_2, window_bounds = array<i64: 1, 32>}, {pipeline_mode = #tpu.pipeline_mode<synchronous>, transform_indices = @transform_3, window_bounds = array<i64: 32, 128>}, {pipeline_mode = #tpu.pipeline_mode<synchronous>, transform_indices = @transform_4, window_bounds = array<i64: 1, 128>}, {transform_indices = @transform_5, window_bounds = array<i64: 16, 128>}]} {
    %c0 = arith.constant 0 : index
    %c0_0 = arith.constant 0 : index
    %0 = vector.load %arg1[%c0, %c0_0] : memref<16x32xbf16, #tpu.memory_space<vmem>>, vector<16x32xbf16>
    %c0_1 = arith.constant 0 : index
    %c0_2 = arith.constant 0 : index
    %1 = vector.load %arg2[%c0_1, %c0_2] : memref<32x32xbf16, #tpu.memory_space<vmem>>, vector<32x32xbf16>
    %cst = arith.constant dense<0.000000e+00> : vector<16x32xf32>
    %2 = tpu.matmul %0, %1, %cst {dimension_numbers = #tpu.dot_dimension_numbers<[1], [0], [0], [1], [0, 0, 1, 1], [], []>} : vector<16x32xbf16>, vector<32x32xbf16>, vector<16x32xf32> -> vector<16x32xf32>
    %c0_3 = arith.constant 0 : index
    %c0_4 = arith.constant 0 : index
    %3 = vector.load %arg3[%c0_3, %c0_4] : memref<1x32xf32, #tpu.memory_space<vmem>>, vector<1x32xf32>
    %4 = vector.broadcast %3 : vector<1x32xf32> to vector<16x32xf32>
    %5 = arith.addf %2, %4 : vector<16x32xf32>
    %cst_5 = arith.constant 0.000000e+00 : f32
    %6 = vector.broadcast %cst_5 : f32 to vector<16x32xf32>
    %7 = arith.maximumf %5, %6 : vector<16x32xf32>
    %8 = arith.truncf %7 : vector<16x32xf32> to vector<16x32xbf16>
    %c0_6 = arith.constant 0 : index
    %c0_7 = arith.constant 0 : index
    %9 = vector.load %arg4[%c0_6, %c0_7] : memref<32x128xbf16, #tpu.memory_space<vmem>>, vector<32x128xbf16>
    %cst_8 = arith.constant dense<0.000000e+00> : vector<16x128xf32>
    %10 = tpu.matmul %8, %9, %cst_8 {dimension_numbers = #tpu.dot_dimension_numbers<[1], [0], [0], [1], [0, 0, 1, 1], [], []>} : vector<16x32xbf16>, vector<32x128xbf16>, vector<16x128xf32> -> vector<16x128xf32>
    %c0_9 = arith.constant 0 : index
    %c0_10 = arith.constant 0 : index
    %11 = vector.load %arg5[%c0_9, %c0_10] : memref<1x128xf32, #tpu.memory_space<vmem>>, vector<1x128xf32>
    %12 = vector.broadcast %11 : vector<1x128xf32> to vector<16x128xf32>
    %13 = arith.addf %10, %12 : vector<16x128xf32>
    %cst_11 = arith.constant dense<0xFF800000> : vector<16xf32>
    %14 = vector.multi_reduction <maximumf>, %13, %cst_11 [1] : vector<16x128xf32> to vector<16xf32>
    %15 = vector.shape_cast %14 : vector<16xf32> to vector<16x1xf32>
    %16 = vector.broadcast %15 : vector<16x1xf32> to vector<16x128xf32>
    %17 = arith.subf %13, %16 : vector<16x128xf32>
    %18 = math.exp %17 : vector<16x128xf32>
    %cst_12 = arith.constant dense<0.000000e+00> : vector<16xf32>
    %19 = vector.multi_reduction <add>, %18, %cst_12 [1] : vector<16x128xf32> to vector<16xf32>
    %20 = vector.shape_cast %19 : vector<16xf32> to vector<16x1xf32>
    %cst_13 = arith.constant 1.000000e+00 : f32
    %21 = vector.broadcast %cst_13 : f32 to vector<16x1xf32>
    %22 = arith.divf %21, %20 : vector<16x1xf32>
    %23 = vector.broadcast %22 : vector<16x1xf32> to vector<16x128xf32>
    %24 = arith.mulf %18, %23 : vector<16x128xf32>
    %c0_14 = arith.constant 0 : index
    %c0_15 = arith.constant 0 : index
    %25 = vector.load %arg6[%c0_14, %c0_15] : memref<16x128xf32, #tpu.memory_space<vmem>>, vector<16x128xf32>
    tpu.vector_store %arg6[%c0_14, %c0_15], %24 {strides = array<i32>} : memref<16x128xf32, #tpu.memory_space<vmem>>, vector<16x128xf32>,
    return
  }
  func.func @transform_0(%arg0: i32) -> (i32, i32) {
    %c0_i32 = arith.constant 0 : i32
    %c0_i32_0 = arith.constant 0 : i32
    return %arg0, %c0_i32 : i32, i32
  }
  func.func @transform_1(%arg0: i32) -> (i32, i32) {
    %c0_i32 = arith.constant 0 : i32
    %c0_i32_0 = arith.constant 0 : i32
    %c0_i32_1 = arith.constant 0 : i32
    return %c0_i32, %c0_i32_0 : i32, i32
  }
  func.func @transform_2(%arg0: i32) -> (i32, i32) {
    %c0_i32 = arith.constant 0 : i32
    %c0_i32_0 = arith.constant 0 : i32
    %c0_i32_1 = arith.constant 0 : i32
    return %c0_i32, %c0_i32_0 : i32, i32
  }
  func.func @transform_3(%arg0: i32) -> (i32, i32) {
    %c0_i32 = arith.constant 0 : i32
    %c0_i32_0 = arith.constant 0 : i32
    %c0_i32_1 = arith.constant 0 : i32
    return %c0_i32, %c0_i32_0 : i32, i32
  }
  func.func @transform_4(%arg0: i32) -> (i32, i32) {
    %c0_i32 = arith.constant 0 : i32
    %c0_i32_0 = arith.constant 0 : i32
    %c0_i32_1 = arith.constant 0 : i32
    return %c0_i32, %c0_i32_0 : i32, i32
  }
  func.func @transform_5(%arg0: i32) -> (i32, i32) {
    %c0_i32 = arith.constant 0 : i32
    %c0_i32_0 = arith.constant 0 : i32
    return %arg0, %c0_i32 : i32, i32
  }
}

</mosaic_0001>

<llo_original>
// kernel: _mlp_forward.1
$region0: #{_mlp_forward.1}
  #allocation0 [shape = 'u32[]', space=smem, size = 0x4, offset = 0x4, fixed_abs, tag = 'smem constant byte address 0x4 - core index']
  #allocation1 [shape = 'u32[72,128]{1,0:T(1,128)}', space=vmem, size = 0x9000, scoped, tag = 'internal scratch']
  %s0 = inlined_call_operand.vmem [shape: bf16[32,32], index: 0, kind: input, shape index: {}]
  %s1 = inlined_call_operand.vmem [shape: bf16[32,32], index: 1, kind: input, shape index: {}]
  %s2 = inlined_call_operand.vmem [shape: f32[1,32], index: 2, kind: input, shape index: {}]
  %s3 = inlined_call_operand.vmem [shape: bf16[32,128], index: 3, kind: input, shape index: {}]
  %s4 = inlined_call_operand.vmem [shape: f32[1,128], index: 4, kind: input, shape index: {}]
  %s5 = inlined_call_operand.vmem [shape: f32[32,128], index: 5, kind: output, shape index: {}]
  %s6 = sld [smem:[#allocation0]]
  $region53: #{_mlp_forward.1} parent=0
    _
  %s8 = ssub.s32 1, %s6
  %s9 = scalar_select 0, %s8, %s6
  loop: start=0, step=1, limit=4
  $region2: #{_mlp_forward.1} parent=0 // loop_pre_header
    _
  $region3: #{_mlp_forward.1} parent=0 // loop_header
    %s11 = sphi 0, %s15
    %p12 = scmp.ge.s32.totalorder %s11, 4
    %s21 = sphi 0, %s23
    %s24 = sphi 0, %s21
    %s25 = sphi 0, %s24
    %s41 = sphi 0, %s25
    %s45 = sphi 0, %s45
    %s47 = sphi 0, %s45
    %s48 = sphi 0, %s47
    %s62 = sphi 0, %s48
    %s66 = sphi 0, %s66
    %s68 = sphi 0, %s66
    %s69 = sphi 0, %s68
    %s83 = sphi 0, %s69
    %s87 = sphi 0, %s87
    %s89 = sphi 0, %s87
    %s90 = sphi 0, %s89
    %s104 = sphi 0, %s90
    %s108 = sphi 0, %s108
    %s110 = sphi 0, %s108
    %s111 = sphi 0, %s110
    %s125 = sphi 0, %s111
    %s131 = sphi 0, %s133
    %s134 = sphi 0, %s131
    %s135 = sphi 0, %s134
    %s151 = sphi 0, %s135
  $region4: #{_mlp_forward.1} parent=0 // loop_header_branch
    %14 = sbr.rel (%p12) target = $region8
  $region5: #{_mlp_forward.1} parent=0 // loop_body
    %s16 = ssub.s32 %s11, 1
    %s17 = ssub.s32 %s11, 2
    %s18 = sadd.s32 %s11, 1
    %s19 = ssub.s32 %s11, %s18
    %p20 = scmp.eq.s32.totalorder %s19, 0
    %s22 = sadd.s32 %s21, 1
    %s23 = scalar_select %p20, %s21, %s22
    %p26 = pneg %p20
    %p27 = scmp.eq.s32.totalorder %s11, 1
    %p28 = por %p26, %p27
    %p29 = scmp.ne.s32.totalorder %s21, %s24
    %p30 = scmp.eq.s32.totalorder %s11, 0
    %p31 = por %p29, %p30
    %p32 = scmp.ne.s32.totalorder %s21, %s24
    %p33 = scmp.eq.s32.totalorder %s16, 1
    %p34 = por %p32, %p33
    %p35 = scmp.ne.s32.totalorder %s24, %s25
    %p36 = scmp.eq.s32.totalorder %s16, 0
    %p37 = por %p35, %p36
    %p38 = scmp.ne.s32.totalorder %s24, %s25
    %p39 = scmp.eq.s32.totalorder %s17, 1
    %p40 = por %p38, %p39
    %p42 = scmp.ne.s32.totalorder %s25, %s41
    %p43 = scmp.eq.s32.totalorder %s17, 0
    %p44 = por %p42, %p43
    %s46 = sadd.s32 %s45, 1
    %p49 = scmp.eq.s32.totalorder %s11, 1
    %p50 = scmp.ne.s32.totalorder %s45, %s47
    %p51 = scmp.eq.s32.totalorder %s11, 0
    %p52 = por %p50, %p51
    %p53 = scmp.ne.s32.totalorder %s45, %s47
    %p54 = scmp.eq.s32.totalorder %s16, 1
    %p55 = por %p53, %p54
    %p56 = scmp.ne.s32.totalorder %s47, %s48
    %p57 = scmp.eq.s32.totalorder %s16, 0
    %p58 = por %p56, %p57
    %p59 = scmp.ne.s32.totalorder %s47, %s48
    %p60 = scmp.eq.s32.totalorder %s17, 1
    %p61 = por %p59, %p60
    %p63 = scmp.ne.s32.totalorder %s48, %s62
    %p64 = scmp.eq.s32.totalorder %s17, 0
    %p65 = por %p63, %p64
    %s67 = sadd.s32 %s66, 1
    %p70 = scmp.eq.s32.totalorder %s11, 1
    %p71 = scmp.ne.s32.totalorder %s66, %s68
    %p72 = scmp.eq.s32.totalorder %s11, 0
    %p73 = por %p71, %p72
    %p74 = scmp.ne.s32.totalorder %s66, %s68
    %p75 = scmp.eq.s32.totalorder %s16, 1
    %p76 = por %p74, %p75
    %p77 = scmp.ne.s32.totalorder %s68, %s69
    %p78 = scmp.eq.s32.totalorder %s16, 0
    %p79 = por %p77, %p78
    %p80 = scmp.ne.s32.totalorder %s68, %s69
    %p81 = scmp.eq.s32.totalorder %s17, 1
    %p82 = por %p80, %p81
    %p84 = scmp.ne.s32.totalorder %s69, %s83
    %p85 = scmp.eq.s32.totalorder %s17, 0
    %p86 = por %p84, %p85
    %s88 = sadd.s32 %s87, 1
    %p91 = scmp.eq.s32.totalorder %s11, 1
    %p92 = scmp.ne.s32.totalorder %s87, %s89
    %p93 = scmp.eq.s32.totalorder %s11, 0
    %p94 = por %p92, %p93
    %p95 = scmp.ne.s32.totalorder %s87, %s89
    %p96 = scmp.eq.s32.totalorder %s16, 1
    %p97 = por %p95, %p96
    %p98 = scmp.ne.s32.totalorder %s89, %s90
    %p99 = scmp.eq.s32.totalorder %s16, 0
    %p100 = por %p98, %p99
    %p101 = scmp.ne.s32.totalorder %s89, %s90
    %p102 = scmp.eq.s32.totalorder %s17, 1
    %p103 = por %p101, %p102
    %p105 = scmp.ne.s32.totalorder %s90, %s104
    %p106 = scmp.eq.s32.totalorder %s17, 0
    %p107 = por %p105, %p106
    %s109 = sadd.s32 %s108, 1
    %p112 = scmp.eq.s32.totalorder %s11, 1
    %p113 = scmp.ne.s32.totalorder %s108, %s110
    %p114 = scmp.eq.s32.totalorder %s11, 0
    %p115 = por %p113, %p114
    %p116 = scmp.ne.s32.totalorder %s108, %s110
    %p117 = scmp.eq.s32.totalorder %s16, 1
    %p118 = por %p116, %p117
    %p119 = scmp.ne.s32.totalorder %s110, %s111
    %p120 = scmp.eq.s32.totalorder %s16, 0
    %p121 = por %p119, %p120
    %p122 = scmp.ne.s32.totalorder %s110, %s111
    %p123 = scmp.eq.s32.totalorder %s17, 1
    %p124 = por %p122, %p123
    %p126 = scmp.ne.s32.totalorder %s111, %s125
    %p127 = scmp.eq.s32.totalorder %s17, 0
    %p128 = por %p126, %p127
    %s129 = ssub.s32 %s11, %s18
    %p130 = scmp.eq.s32.totalorder %s129, 0
    %s132 = sadd.s32 %s131, 1
    %s133 = scalar_select %p130, %s131, %s132
    %p136 = pneg %p130
    %p137 = scmp.eq.s32.totalorder %s11, 1
    %p138 = por %p136, %p137
    %p139 = scmp.ne.s32.totalorder %s131, %s134
    %p140 = scmp.eq.s32.totalorder %s11, 0
    %p141 = por %p139, %p140
    %p142 = scmp.ne.s32.totalorder %s131, %s134
    %p143 = scmp.eq.s32.totalorder %s16, 1
    %p144 = por %p142, %p143
    %p145 = scmp.ne.s32.totalorder %s134, %s135
    %p146 = scmp.eq.s32.totalorder %s16, 0
    %p147 = por %p145, %p146
    %p148 = scmp.ne.s32.totalorder %s134, %s135
    %p149 = scmp.eq.s32.totalorder %s17, 1
    %p150 = por %p148, %p149
    %p152 = scmp.ne.s32.totalorder %s135, %s151
    %p153 = scmp.eq.s32.totalorder %s17, 0
    %p154 = por %p152, %p153
    %p155 = scmp.le.s32.totalorder 1, %s11
    %p156 = scmp.lt.s32.totalorder %s11, 3
    %p157 = pnand %p155, %p156
    %p158 = pneg %p157
    // Predicated region
    $region9: #{_mlp_forward.1} parent=5 // pred_check
      _
    $region10: #{_mlp_forward.1} parent=5 // pred_check_branch
      %160 = sbr.rel (%p157) target = $region12
    $region11: #{_mlp_forward.1} parent=5 // pred_region
      %s161 = ssub.s32 %s11, 1
      // Predicated region
      $region13: #{_mlp_forward.1} parent=11 // pred_check
        %p162 = pneg %p58
      $region14: #{_mlp_forward.1} parent=11 // pred_check_branch
        %164 = sbr.rel (%p162) target = $region16
      $region15: #{_mlp_forward.1} parent=11 // pred_region
        _
      $region16: #{_mlp_forward.1} parent=11 // pred_fallthru
        _
      // Predicated region
      $region17: #{_mlp_forward.1} parent=11 // pred_check
        %p165 = pneg %p79
      $region18: #{_mlp_forward.1} parent=11 // pred_check_branch
        %167 = sbr.rel (%p165) target = $region20
      $region19: #{_mlp_forward.1} parent=11 // pred_region
        _
      $region20: #{_mlp_forward.1} parent=11 // pred_fallthru
        _
      // Predicated region
      $region21: #{_mlp_forward.1} parent=11 // pred_check
        %p168 = pneg %p100
      $region22: #{_mlp_forward.1} parent=11 // pred_check_branch
        %170 = sbr.rel (%p168) target = $region24
      $region23: #{_mlp_forward.1} parent=11 // pred_region
        _
      $region24: #{_mlp_forward.1} parent=11 // pred_fallthru
        _
      // Predicated region
      $region25: #{_mlp_forward.1} parent=11 // pred_check
        %p171 = pneg %p121
      $region26: #{_mlp_forward.1} parent=11 // pred_check_branch
        %173 = sbr.rel (%p171) target = $region28
      $region27: #{_mlp_forward.1} parent=11 // pred_region
        _
      $region28: #{_mlp_forward.1} parent=11 // pred_fallthru
        _
    $region12: #{_mlp_forward.1} parent=5 // pred_fallthru
      _
    %p174 = scmp.lt.s32.totalorder %s11, 2
    // Predicated region
    $region29: #{_mlp_forward.1} parent=5 // pred_check
      %p175 = pneg %p174
    $region30: #{_mlp_forward.1} parent=5 // pred_check_branch
      %177 = sbr.rel (%p175) target = $region32
    $region31: #{_mlp_forward.1} parent=5 // pred_region
      // Predicated region
      $region33: #{_mlp_forward.1} parent=31 // pred_check
        %p178 = pneg %p31
      $region34: #{_mlp_forward.1} parent=31 // pred_check_branch
        %180 = sbr.rel (%p178) target = $region36
      $region35: #{_mlp_forward.1} parent=31 // pred_region
        %s181 = smul.u32 2, %s11
        %p182 = scmp.lt.s32.totalorder %s181, 3
        %s183 = scalar_select %p182, %s181, 3
        %s184 = smul.addr %s183, 4
        %s185 = scalar_lea.vmem %s0, %s184
        %s186 = smul.u32 2, %s11
      $region36: #{_mlp_forward.1} parent=31 // pred_fallthru
        _
    $region32: #{_mlp_forward.1} parent=5 // pred_fallthru
      _
    %p187 = scmp.le.s32.totalorder 1, %s11
    %p188 = scmp.lt.s32.totalorder %s11, 3
    %p189 = pnand %p187, %p188
    %p190 = pneg %p189
    // Predicated region
    $region37: #{_mlp_forward.1} parent=5 // pred_check
      _
    $region38: #{_mlp_forward.1} parent=5 // pred_check_branch
      %192 = sbr.rel (%p189) target = $region40
    $region39: #{_mlp_forward.1} parent=5 // pred_region
      %s193 = ssub.s32 %s11, 1
      %s194 = smul.u32 2, %s16
      %p195 = scmp.lt.s32.totalorder %s194, 3
      %s196 = scalar_select %p195, %s194, 3
      %s197 = smul.addr %s196, 4
      %s198 = scalar_lea.vmem %s0, %s197
      %p199 = pneg %p37
      %p200 = pneg %p34
      %p201 = pneg %p58
      %p202 = pneg %p55
      %p203 = pneg %p79
      %p204 = pneg %p76
      %p205 = pneg %p100
      %p206 = pneg %p97
      %p207 = pneg %p121
      %p208 = pneg %p118
      %p209 = pneg %p147
      %p210 = pneg %p144
      %s211 = smul.u32 2, %s16
      %p212 = scmp.lt.s32.totalorder %s211, 3
      %s213 = scalar_select %p212, %s211, 3
      %s214 = smul.addr %s213, 8
      %s215 = scalar_lea.vmem %s5, %s214
      %s216 = smul.u32 2, %s16
      %p217 = scmp.lt.s32.totalorder %s216, 3
      %s218 = scalar_select %p217, %s216, 3
      %s219 = smul.addr %s218, 4
      %s220 = scalar_lea.vmem %s0, %s219
      %s221 = smul.u32 2, %s16
      %s222 = smul.u32 2, %s16
      %p223 = scmp.lt.s32.totalorder %s222, 3
      %s224 = scalar_select %p223, %s222, 3
      %s225 = smul.addr %s224, 8
      %s226 = scalar_lea.vmem %s5, %s225
      %s227 = smul.u32 2, %s16
      %v229 = vld [vmem:[%s220] sm:$0xf]
      %v230 = vld [vmem:[%s220 + $0x4] sm:$0xf]
      %v231 = vld [vmem:[%s1] sm:$0xf]
      %v232 = vld [vmem:[%s1 + $0x4] sm:$0xf]
      %v233 = vld [vmem:[%s1 + $0x8] sm:$0xf]
      %v234 = vld [vmem:[%s1 + $0xc] sm:$0xf]
      %v235 = vld [vmem:[%s2] sm:$0x1]
      %v237 = vperm.slane %v235, 0
      %v241 = vunpack.c.l.b16 %v229
      %v242 = vunpack.c.l.b16 %v230
      %v243 = vpack.c.b16 %v242, %v241
      %v248 = vunpack.c.l.b16 %v231
      %v249 = vunpack.c.l.b16 %v232
      %v250 = vunpack.c.l.b16 %v233
      %v251 = vunpack.c.l.b16 %v234
      %v252 = vpack.c.b16 %v249, %v248
      %v253 = vpack.c.b16 %v251, %v250
      %vm256 = vcmask 261120
      %v258 = vsel %vm256, %v243, 0
      %260 = vmatpush.bf16.msra.mxu0 0
      %261 = vmatpush.bf16.msra.mxu0 0
      %262 = vmatpush.bf16.msra.mxu0 0
      %263 = vmatpush.bf16.msra.mxu0 0
      %264 = vmatpush.bf16.msra.mxu0 0
      %265 = vmatpush.bf16.msra.mxu0 0
      %266 = vmatpush.bf16.msra.mxu0 %v253
      %267 = vmatpush.bf16.msra.mxu0 %v252
      %268 = vmatmul.bf16.gmra.mxu0 %v258
      %v269 = vpop.f32.mrf.mxu0
      %v270 = vadd.f32 %v237, %v269
      %v271 = vpop.f32.mrf.mxu0
      %v272 = vadd.f32 %v237, %v271
      %273 = vdwg.mxu0
      %v274 = vmax.f32 %v270, 0.0
      %v275 = vmax.f32 %v272, 0.0
      %v276 = vpack.c.bf16 %v275, %v274
      %v277 = vld [vmem:[%s3] sm:$0xf]
      %v278 = vld [vmem:[%s3 + $0x4] sm:$0xf]
      %v279 = vld [vmem:[%s3 + $0x8] sm:$0xf]
      %v280 = vld [vmem:[%s3 + $0xc] sm:$0xf]
      %v281 = vld [vmem:[%s4] sm:$0x1]
      %v283 = vperm.slane %v281, 0
      %v289 = vunpack.c.l.b16 %v277
      %v290 = vunpack.c.l.b16 %v278
      %v291 = vunpack.c.l.b16 %v279
      %v292 = vunpack.c.l.b16 %v280
      %v293 = vpack.c.b16 %v290, %v289
      %v294 = vpack.c.b16 %v292, %v291
      %v298 = vsel %vm256, %v276, 0
      %300 = vmatpush.bf16.msra.mxu0 0
      %301 = vmatpush.bf16.msra.mxu0 0
      %302 = vmatpush.bf16.msra.mxu0 0
      %303 = vmatpush.bf16.msra.mxu0 0
      %304 = vmatpush.bf16.msra.mxu0 0
      %305 = vmatpush.bf16.msra.mxu0 0
      %306 = vmatpush.bf16.msra.mxu0 %v294
      %307 = vmatpush.bf16.msra.mxu0 %v293
      %308 = vmatmul.bf16.gmra.mxu0 %v298
      %v309 = vpop.f32.mrf.mxu0
      %v310 = vadd.f32 %v283, %v309
      %v311 = vpop.f32.mrf.mxu0
      %v312 = vadd.f32 %v283, %v311
      %313 = vdwg.mxu0
      %314 = vmax.xlane.f32.xlu0 %v310
      %v315 = vpop.xlane.xlu0 %314
      %316 = vmax.xlane.f32.xlu0 %v312
      %v317 = vpop.xlane.xlu0 %316
      %v318 = vsub.f32 %v310, %v315
      %v319 = vsub.f32 %v312, %v317
      %v320 = vmul.f32 %v318, 1.442695
      %v321 = vpow.pop %v320
      %v322 = vmul.f32 %v319, 1.442695
      %v323 = vpow.pop %v322
      %324 = vadd.xlane.f32.xlu0 %v321
      %v325 = vpop.xlane.xlu0 %324
      %326 = vadd.xlane.f32.xlu0 %v323
      %v327 = vpop.xlane.xlu0 %326
      %v328 = vrcp.pop %v325
      %v329 = vmul.f32 %v325, %v328
      %v330 = vsub.f32 1.0, %v329
      %v331 = vmul.f32 %v328, %v330
      %v332 = vadd.f32 %v328, %v331
      %vm333 = vweird.f32 %v325
      %vm334 = vweird.f32 %v328
      %vm335 = vmor %vm333, %vm334
      %v336 = vsel %vm335, %v328, %v332
      %v337 = vand.u32 2147483647, %v325
      %vm338 = vcmp.eq.f32.partialorder %v337, 8.507059e+37
      %v339 = vand.u32 %v325, 2147483648
      %v340 = vor.u32 1.1754944e-38, %v339
      %v341 = vsel %vm338, %v340, %v336
      %v342 = vmul.f32 1.0, %v341
      %v343 = vrcp.pop %v327
      %v344 = vmul.f32 %v327, %v343
      %v345 = vsub.f32 1.0, %v344
      %v346 = vmul.f32 %v343, %v345
      %v347 = vadd.f32 %v343, %v346
      %vm348 = vweird.f32 %v327
      %vm349 = vweird.f32 %v343
      %vm350 = vmor %vm348, %vm349
      %v351 = vsel %vm350, %v343, %v347
      %v352 = vand.u32 2147483647, %v327
      %vm353 = vcmp.eq.f32.partialorder %v352, 8.507059e+37
      %v354 = vand.u32 %v327, 2147483648
      %v355 = vor.u32 1.1754944e-38, %v354
      %v356 = vsel %vm353, %v355, %v351
      %v357 = vmul.f32 1.0, %v356
      %v358 = vmul.f32 %v321, %v342
      %v359 = vmul.f32 %v323, %v357
      %360 = vst [vmem:[%s226] sm:$0xff] %v358
      %361 = vst [vmem:[%s226 + $0x8] sm:$0xff] %v359
      %s362 = smul.u32 2, %s16
      %p363 = scmp.lt.s32.totalorder %s362, 3
      %s364 = scalar_select %p363, %s362, 3
      %s365 = smul.addr %s364, 8
      %s366 = scalar_lea.vmem %s5, %s365
      // Predicated region
      $region41: #{_mlp_forward.1} parent=39 // pred_check
        %p367 = pneg %p144
      $region42: #{_mlp_forward.1} parent=39 // pred_check_branch
        %369 = sbr.rel (%p367) target = $region44
      $region43: #{_mlp_forward.1} parent=39 // pred_region
        %s370 = smul.u32 2, %s16
      $region44: #{_mlp_forward.1} parent=39 // pred_fallthru
        _
    $region40: #{_mlp_forward.1} parent=5 // pred_fallthru
      _
    %p371 = scmp.le.s32.totalorder 2, %s11
    // Predicated region
    $region45: #{_mlp_forward.1} parent=5 // pred_check
      %p372 = pneg %p371
    $region46: #{_mlp_forward.1} parent=5 // pred_check_branch
      %374 = sbr.rel (%p372) target = $region48
    $region47: #{_mlp_forward.1} parent=5 // pred_region
      %s375 = ssub.s32 %s11, 2
      // Predicated region
      $region49: #{_mlp_forward.1} parent=47 // pred_check
        %p376 = pneg %p150
      $region50: #{_mlp_forward.1} parent=47 // pred_check_branch
        %378 = sbr.rel (%p376) target = $region52
      $region51: #{_mlp_forward.1} parent=47 // pred_region
        %s379 = smul.u32 2, %s17
        %p380 = scmp.lt.s32.totalorder %s379, 3
        %s381 = scalar_select %p380, %s379, 3
        %s382 = smul.addr %s381, 8
        %s383 = scalar_lea.vmem %s5, %s382
      $region52: #{_mlp_forward.1} parent=47 // pred_fallthru
        _
    $region48: #{_mlp_forward.1} parent=5 // pred_fallthru
      _
  $region6: #{_mlp_forward.1} parent=0 // loop_footer
    %s15 = sadd.s32 1, %s11
  $region7: #{_mlp_forward.1} parent=0 // loop_footer_branch
    %10 = sbr.rel target = $region3
  $region8: #{_mlp_forward.1} parent=0 // loop_exit
    _

</llo_original>
